<compile_context>
chip_gen: v5e
topology: v5e:2x2
jax: 0.10.0
libtpu: 0.0.40
codegen_flags: <defaults>
</compile_context>

<pallas_src>
import functools

import jax
import jax.numpy as jnp
from jax.experimental import pallas as pl
from jax.experimental.pallas import tpu as pltpu


def _head_kernel(h_ref, w1_ref, b1_ref, w2_ref, b2_ref, w3_ref, b3_ref,
                 o_ref, acc_ref, *, inv_t):
    t = pl.program_id(1)

    @pl.when(t == 0)
    def _():
        acc_ref[...] = jnp.zeros_like(acc_ref)

    # Streaming time-sum of this (Bt, Tt, H) tile, accumulated in f32.
    acc_ref[...] += jnp.sum(h_ref[...], axis=1, dtype=jnp.float32)

    @pl.when(t == pl.num_programs(1) - 1)
    def _():
        # pooled_output = last_hidden_state.mean(dim=1) over the TRUE T.
        pooled = acc_ref[...] * inv_t                               # [Bt, H] f32

        # classifier: Linear -> ReLU -> (Dropout=id) -> Linear -> ReLU -> Linear
        x = jnp.dot(pooled, w1_ref[...], preferred_element_type=jnp.float32)
        x = jnp.maximum(x + b1_ref[...], 0.0)
        x = jnp.dot(x, w2_ref[...], preferred_element_type=jnp.float32)
        x = jnp.maximum(x + b2_ref[...], 0.0)
        x = jnp.dot(x, w3_ref[...], preferred_element_type=jnp.float32)
        o_ref[...] = (x + b3_ref[...]).astype(o_ref.dtype)


def _choose_tiles(B, T, H, itemsize, max_tile_bytes):
    """Pick (Bt, Tt): one activation tile <= max_tile_bytes, dims respecting the
    (8,128)/(16,128) sublane rules (H is passed whole so it has no constraint)."""
    bt = 8                                       # sublane multiple for f32 pooled/acc
    t_align = 16 if itemsize == 2 else 8         # bf16 packs 2 rows per sublane
    rows = max_tile_bytes // (bt * H * itemsize)
    tt = max(t_align, (rows // t_align) * t_align)
    t_padded_min = pl.cdiv(T, t_align) * t_align
    return bt, min(tt, t_padded_min)


def wavlm_dementia_head(last_hidden_state, params, *, max_tile_bytes=8 << 20):
    """last_hidden_state: [B, T, H] (f32 or bf16). Returns logits [B, 1] f32."""
    B, T, H = last_hidden_state.shape
    itemsize = jnp.dtype(last_hidden_state.dtype).itemsize
    w1, b1, w2, b2, w3, b3 = (params["w1"], params["b1"], params["w2"],
                              params["b2"], params["w3"], params["b3"])

    bt, tt = _choose_tiles(B, T, H, itemsize, max_tile_bytes)
    Bp = pl.cdiv(B, bt) * bt
    Tp = pl.cdiv(T, tt) * tt
    if (Bp, Tp) != (B, T):
        # Zero-padding T is exact: zeros add nothing to the sum and we still
        # divide by the true T. Padded batch rows are sliced off below.
        last_hidden_state = jnp.pad(
            last_hidden_state, ((0, Bp - B), (0, Tp - T), (0, 0)))

    grid = (Bp // bt, Tp // tt)                  # reduction (T) axis last
    kernel = functools.partial(_head_kernel, inv_t=1.0 / T)

    def pinned(arr):                              # weights: DMA'd once, stay resident
        return pl.BlockSpec(arr.shape, lambda b, t: (0, 0))

    out = pl.pallas_call(
        kernel,
        out_shape=jax.ShapeDtypeStruct((Bp, 1), jnp.float32),
        grid_spec=pltpu.PrefetchScalarGridSpec(
            num_scalar_prefetch=0,
            grid=grid,
            in_specs=[
                pl.BlockSpec((bt, tt, H), lambda b, t: (b, t, 0)),
                pinned(w1), pinned(b1), pinned(w2),
                pinned(b2), pinned(w3), pinned(b3),
            ],
            out_specs=pl.BlockSpec((bt, 1), lambda b, t: (b, 0)),
            scratch_shapes=[pltpu.VMEM((bt, H), jnp.float32)],
        ),
        compiler_params=pltpu.CompilerParams(
            dimension_semantics=("parallel", "arbitrary")),
    )(last_hidden_state, w1, b1, w2, b2, w3, b3)
    return out[:B]


def init_params(key, hidden_size):
    """Deterministic synthetic parameters matching the classifier Sequential."""
    k1, k2, k3 = jax.random.split(key, 3)

    def linear(k, fan_in, fan_out):
        scale = 1.0 / jnp.sqrt(fan_in)
        w = jax.random.uniform(k, (fan_in, fan_out), jnp.float32, -scale, scale)
        b = jnp.zeros((1, fan_out), jnp.float32)
        return w, b

    w1, b1 = linear(k1, hidden_size, 512)
    w2, b2 = linear(k2, 512, 256)
    w3, b3 = linear(k3, 256, 1)
    return {"w1": w1, "b1": b1, "w2": w2, "b2": b2, "w3": w3, "b3": b3}


def reference_forward(last_hidden_state, params):
    """Pure-JAX reference of the PyTorch forward (eval mode)."""
    pooled = jnp.mean(last_hidden_state, axis=1)
    x = jnp.maximum(pooled @ params["w1"] + params["b1"], 0.0)
    x = jnp.maximum(x @ params["w2"] + params["b2"], 0.0)
    return x @ params["w3"] + params["b3"]


if __name__ == "__main__":
    # Small shapes consistent with the module; H=128 keeps vregs lane-dense.
    B, T, H = 2, 24, 128
    key = jax.random.PRNGKey(0)
    k_h, k_p = jax.random.split(key)

    # Stand-in for wavlm(...).last_hidden_state; stream it as bf16 (memory-bound
    # kernel -> half the HBM bytes). The f32 accumulator preserves precision.
    hs_f32 = jax.random.normal(k_h, (B, T, H), jnp.float32)
    hs = hs_f32.astype(jnp.bfloat16)
    params = init_params(k_p, H)

    # Tiny tile budget so the demo exercises the multi-step streaming reduction
    # (grid T axis > 1) even at toy sequence length.
    logits = wavlm_dementia_head(hs, params, max_tile_bytes=32 * 1024)
    logits = jax.block_until_ready(logits)

    ref = reference_forward(hs.astype(jnp.float32), params)
    assert logits.shape == (B, 1)
    assert jnp.allclose(logits, ref, atol=1e-3, rtol=1e-3), (logits, ref)
    print("KERNEL_OK")
</pallas_src>

<mosaic_0001>
module attributes {stable_mosaic.version = 11 : i64} {
  func.func @_head_kernel(%arg0: i32, %arg1: i32, %arg2: memref<8x16x128xbf16, #tpu.memory_space<vmem>>, %arg3: memref<128x512xf32, #tpu.memory_space<vmem>>, %arg4: memref<1x512xf32, #tpu.memory_space<vmem>>, %arg5: memref<512x256xf32, #tpu.memory_space<vmem>>, %arg6: memref<1x256xf32, #tpu.memory_space<vmem>>, %arg7: memref<256x1xf32, #tpu.memory_space<vmem>>, %arg8: memref<1x1xf32, #tpu.memory_space<vmem>>, %arg9: memref<8x1xf32, #tpu.memory_space<vmem>>, %arg10: memref<8x128xf32, #tpu.memory_space<vmem>>) attributes {dimension_semantics = [#tpu.dimension_semantics<parallel>, #tpu.dimension_semantics<arbitrary>], iteration_bounds = array<i64: 1, 2>, scalar_prefetch = 0 : i64, scratch_operands = 1 : i64, tpu.core_type = #tpu.core_type<tc>, window_params = [{transform_indices = @transform_0, window_bounds = array<i64: 8, 16, 128>}, {pipeline_mode = #tpu.pipeline_mode<synchronous>, transform_indices = @transform_1, window_bounds = array<i64: 128, 512>}, {pipeline_mode = #tpu.pipeline_mode<synchronous>, transform_indices = @transform_2, window_bounds = array<i64: 1, 512>}, {pipeline_mode = #tpu.pipeline_mode<synchronous>, transform_indices = @transform_3, window_bounds = array<i64: 512, 256>}, {pipeline_mode = #tpu.pipeline_mode<synchronous>, transform_indices = @transform_4, window_bounds = array<i64: 1, 256>}, {pipeline_mode = #tpu.pipeline_mode<synchronous>, transform_indices = @transform_5, window_bounds = array<i64: 256, 1>}, {pipeline_mode = #tpu.pipeline_mode<synchronous>, transform_indices = @transform_6, window_bounds = array<i64: 1, 1>}, {transform_indices = @transform_7, window_bounds = array<i64: 8, 1>}]} {
    %c0_i32 = arith.constant 0 : i32
    %0 = arith.cmpi eq, %arg1, %c0_i32 : i32
    %1 = arith.extui %0 : i1 to i32
    %c0_i32_0 = arith.constant 0 : i32
    %2 = arith.cmpi ne, %1, %c0_i32_0 : i32
    scf.if %2 {
      %cst_8 = arith.constant 0.000000e+00 : f32
      %12 = vector.broadcast %cst_8 : f32 to vector<8x128xf32>
      %c0_9 = arith.constant 0 : index
      %c0_10 = arith.constant 0 : index
      %13 = vector.load %arg10[%c0_9, %c0_10] : memref<8x128xf32, #tpu.memory_space<vmem>>, vector<8x128xf32>
      tpu.vector_store %arg10[%c0_9, %c0_10], %12 {strides = array<i32>} : memref<8x128xf32, #tpu.memory_space<vmem>>, vector<8x128xf32>,
    } else {
    }
    %c0 = arith.constant 0 : index
    %c0_1 = arith.constant 0 : index
    %3 = vector.load %arg10[%c0, %c0_1] : memref<8x128xf32, #tpu.memory_space<vmem>>, vector<8x128xf32>
    %c0_2 = arith.constant 0 : index
    %c0_3 = arith.constant 0 : index
    %c0_4 = arith.constant 0 : index
    %4 = vector.load %arg2[%c0_2, %c0_3, %c0_4] : memref<8x16x128xbf16, #tpu.memory_space<vmem>>, vector<8x16x128xbf16>
    %5 = arith.extf %4 : vector<8x16x128xbf16> to vector<8x16x128xf32>
    %cst = arith.constant dense<0.000000e+00> : vector<8x128xf32>
    %6 = vector.multi_reduction <add>, %5, %cst [1] : vector<8x16x128xf32> to vector<8x128xf32>
    %7 = arith.addf %3, %6 : vector<8x128xf32>
    %c0_5 = arith.constant 0 : index
    %c0_6 = arith.constant 0 : index
    %8 = vector.load %arg10[%c0_5, %c0_6] : memref<8x128xf32, #tpu.memory_space<vmem>>, vector<8x128xf32>
    tpu.vector_store %arg10[%c0_5, %c0_6], %7 {strides = array<i32>} : memref<8x128xf32, #tpu.memory_space<vmem>>, vector<8x128xf32>,
    %c1_i32 = arith.constant 1 : i32
    %9 = arith.cmpi eq, %arg1, %c1_i32 : i32
    %10 = arith.extui %9 : i1 to i32
    %c0_i32_7 = arith.constant 0 : i32
    %11 = arith.cmpi ne, %10, %c0_i32_7 : i32
    scf.if %11 {
      %c0_8 = arith.constant 0 : index
      %c0_9 = arith.constant 0 : index
      %12 = vector.load %arg10[%c0_8, %c0_9] : memref<8x128xf32, #tpu.memory_space<vmem>>, vector<8x128xf32>
      %cst_10 = arith.constant 0.0416666679 : f32
      %13 = vector.broadcast %cst_10 : f32 to vector<8x128xf32>
      %14 = arith.mulf %12, %13 : vector<8x128xf32>
      %c0_11 = arith.constant 0 : index
      %c0_12 = arith.constant 0 : index
      %15 = vector.load %arg3[%c0_11, %c0_12] : memref<128x512xf32, #tpu.memory_space<vmem>>, vector<128x512xf32>
      %cst_13 = arith.constant dense<0.000000e+00> : vector<8x512xf32>
      %16 = tpu.matmul %14, %15, %cst_13 {dimension_numbers = #tpu.dot_dimension_numbers<[1], [0], [0], [1], [0, 0, 1, 1], [], []>} : vector<8x128xf32>, vector<128x512xf32>, vector<8x512xf32> -> vector<8x512xf32>
      %c0_14 = arith.constant 0 : index
      %c0_15 = arith.constant 0 : index
      %17 = vector.load %arg4[%c0_14, %c0_15] : memref<1x512xf32, #tpu.memory_space<vmem>>, vector<1x512xf32>
      %18 = vector.broadcast %17 : vector<1x512xf32> to vector<8x512xf32>
      %19 = arith.addf %16, %18 : vector<8x512xf32>
      %cst_16 = arith.constant 0.000000e+00 : f32
      %20 = vector.broadcast %cst_16 : f32 to vector<8x512xf32>
      %21 = arith.maximumf %19, %20 : vector<8x512xf32>
      %c0_17 = arith.constant 0 : index
      %c0_18 = arith.constant 0 : index
      %22 = vector.load %arg5[%c0_17, %c0_18] : memref<512x256xf32, #tpu.memory_space<vmem>>, vector<512x256xf32>
      %cst_19 = arith.constant dense<0.000000e+00> : vector<8x256xf32>
      %23 = tpu.matmul %21, %22, %cst_19 {dimension_numbers = #tpu.dot_dimension_numbers<[1], [0], [0], [1], [0, 0, 1, 1], [], []>} : vector<8x512xf32>, vector<512x256xf32>, vector<8x256xf32> -> vector<8x256xf32>
      %c0_20 = arith.constant 0 : index
      %c0_21 = arith.constant 0 : index
      %24 = vector.load %arg6[%c0_20, %c0_21] : memref<1x256xf32, #tpu.memory_space<vmem>>, vector<1x256xf32>
      %25 = vector.broadcast %24 : vector<1x256xf32> to vector<8x256xf32>
      %26 = arith.addf %23, %25 : vector<8x256xf32>
      %cst_22 = arith.constant 0.000000e+00 : f32
      %27 = vector.broadcast %cst_22 : f32 to vector<8x256xf32>
      %28 = arith.maximumf %26, %27 : vector<8x256xf32>
      %c0_23 = arith.constant 0 : index
      %c0_24 = arith.constant 0 : index
      %29 = vector.load %arg7[%c0_23, %c0_24] : memref<256x1xf32, #tpu.memory_space<vmem>>, vector<256x1xf32>
      %cst_25 = arith.constant dense<0.000000e+00> : vector<8x1xf32>
      %30 = tpu.matmul %28, %29, %cst_25 {dimension_numbers = #tpu.dot_dimension_numbers<[1], [0], [0], [1], [0, 0, 1, 1], [], []>} : vector<8x256xf32>, vector<256x1xf32>, vector<8x1xf32> -> vector<8x1xf32>
      %c0_26 = arith.constant 0 : index
      %c0_27 = arith.constant 0 : index
      %31 = vector.load %arg8[%c0_26, %c0_27] : memref<1x1xf32, #tpu.memory_space<vmem>>, vector<1x1xf32>
      %32 = vector.broadcast %31 : vector<1x1xf32> to vector<8x1xf32>
      %33 = arith.addf %30, %32 : vector<8x1xf32>
      %c0_28 = arith.constant 0 : index
      %c0_29 = arith.constant 0 : index
      %34 = vector.load %arg9[%c0_28, %c0_29] : memref<8x1xf32, #tpu.memory_space<vmem>>, vector<8x1xf32>
      tpu.vector_store %arg9[%c0_28, %c0_29], %33 {strides = array<i32>} : memref<8x1xf32, #tpu.memory_space<vmem>>, vector<8x1xf32>,
    } else {
    }
    return
  }
  func.func @transform_0(%arg0: i32, %arg1: i32) -> (i32, i32, i32) {
    %c0_i32 = arith.constant 0 : i32
    %c0_i32_0 = arith.constant 0 : i32
    return %arg0, %arg1, %c0_i32 : i32, i32, i32
  }
  func.func @transform_1(%arg0: i32, %arg1: i32) -> (i32, i32) {
    %c0_i32 = arith.constant 0 : i32
    %c0_i32_0 = arith.constant 0 : i32
    %c0_i32_1 = arith.constant 0 : i32
    return %c0_i32, %c0_i32_0 : i32, i32
  }
  func.func @transform_2(%arg0: i32, %arg1: i32) -> (i32, i32) {
    %c0_i32 = arith.constant 0 : i32
    %c0_i32_0 = arith.constant 0 : i32
    %c0_i32_1 = arith.constant 0 : i32
    return %c0_i32, %c0_i32_0 : i32, i32
  }
  func.func @transform_3(%arg0: i32, %arg1: i32) -> (i32, i32) {
    %c0_i32 = arith.constant 0 : i32
    %c0_i32_0 = arith.constant 0 : i32
    %c0_i32_1 = arith.constant 0 : i32
    return %c0_i32, %c0_i32_0 : i32, i32
  }
  func.func @transform_4(%arg0: i32, %arg1: i32) -> (i32, i32) {
    %c0_i32 = arith.constant 0 : i32
    %c0_i32_0 = arith.constant 0 : i32
    %c0_i32_1 = arith.constant 0 : i32
    return %c0_i32, %c0_i32_0 : i32, i32
  }
  func.func @transform_5(%arg0: i32, %arg1: i32) -> (i32, i32) {
    %c0_i32 = arith.constant 0 : i32
    %c0_i32_0 = arith.constant 0 : i32
    %c0_i32_1 = arith.constant 0 : i32
    return %c0_i32, %c0_i32_0 : i32, i32
  }
  func.func @transform_6(%arg0: i32, %arg1: i32) -> (i32, i32) {
    %c0_i32 = arith.constant 0 : i32
    %c0_i32_0 = arith.constant 0 : i32
    %c0_i32_1 = arith.constant 0 : i32
    return %c0_i32, %c0_i32_0 : i32, i32
  }
  func.func @transform_7(%arg0: i32, %arg1: i32) -> (i32, i32) {
    %c0_i32 = arith.constant 0 : i32
    %c0_i32_0 = arith.constant 0 : i32
    return %arg0, %c0_i32 : i32, i32
  }
}

</mosaic_0001>

<llo_original>
// kernel: tpu_custom_call.1
$region0: #{tpu_custom_call.1}
  #allocation0 [shape = 'u32[]', space=smem, size = 0x4, offset = 0x4, fixed_abs, tag = 'smem constant byte address 0x4 - core index']
  #allocation1 [shape = 'u32[72,128]{1,0:T(1,128)}', space=vmem, size = 0x9000, scoped, tag = 'internal scratch']
  #allocation2 [shape = 'f32[8,128]{1,0:T(8,128)}', space=vmem, size = 0x1000, scoped, tag = 'scratch operand']
  #allocation3 [shape = 'f32[1,1]{1,0:T(1,128)S(1)}', space=vmem, size = 0x200, scoped, tag = 'scoped memory for tpu_custom_call.1']
  %s0 = inlined_call_operand.vmem [shape: bf16[8,32,128], index: 0, kind: input, shape index: {}]
  %s1 = inlined_call_operand.hbm [shape: f32[128,512], index: 1, kind: input, shape index: {}]
  %s2 = inlined_call_operand.vmem [shape: f32[1,512], index: 2, kind: input, shape index: {}]
  %s3 = inlined_call_operand.hbm [shape: f32[512,256], index: 3, kind: input, shape index: {}]
  %s4 = inlined_call_operand.vmem [shape: f32[1,256], index: 4, kind: input, shape index: {}]
  %s5 = inlined_call_operand.vmem [shape: f32[256,1], index: 5, kind: input, shape index: {}]
  %s6 = inlined_call_operand.<no memory space> [shape: f32[1,1], index: 6, kind: input, shape index: {}]
  %s7 = inlined_call_operand.vmem [shape: f32[8,1], index: 7, kind: output, shape index: {}]
  %s8 = sld [smem:[#allocation0]]
  $region118: #{tpu_custom_call.1} parent=0
    _
  %s10 = ssub.s32 1, %s8
  %s11 = scalar_select 0, %s10, %s8
  %v12 = vstv %s6
  %13 = vst [vmem:[#allocation3] sm:$0x1] %v12
  $region1: #{tpu_custom_call.1} parent=0
    #allocation4 [shape = 'u8[65536]{0}', space=vmem, size = 0x10000, scoped, tag = 'input window, operand 0']
    #allocation5 [shape = 'u8[262144]{0}', space=vmem, size = 0x40000, scoped, tag = 'input window, operand 1, single buffered']
    #allocation6 [shape = 's32[2]{0}', space=sflag, size = 0x8, scoped, tag = 'scoped memory for tpu_custom_call.1']
    #allocation7 [shape = 'u8[524288]{0}', space=vmem, size = 0x80000, scoped, tag = 'input window, operand 3, single buffered']
    #allocation8 [shape = 's32[1]{0}', space=sflag, size = 0x4, scoped, tag = 'scoped memory for tpu_custom_call.1']
    %14 = vsyncpa [#allocation6], 0
    %15 = vsyncpa [#allocation8], 0
    loop: start=0, step=1, limit=4
    $region2: #{tpu_custom_call.1} parent=1 // loop_pre_header
      _
    $region3: #{tpu_custom_call.1} parent=1 // loop_header
      %s17 = sphi 0, %s21
      %p18 = scmp.ge.s32.totalorder %s17, 4
      %s24 = sphi 0, %s36
      %s25 = sphi 0, %s32
      %s26 = sphi 0, %s24
      %s27 = sphi 0, %s25
      %s28 = sphi 0, %s26
      %s29 = sphi 0, %s27
      %s41 = sphi 0, %s43
      %s44 = sphi 0, %s41
      %s45 = sphi 0, %s44
      %s61 = sphi 0, %s45
      %s65 = sphi 0, %s65
      %s67 = sphi 0, %s65
      %s68 = sphi 0, %s67
      %s82 = sphi 0, %s68
      %s86 = sphi 0, %s86
      %s88 = sphi 0, %s86
      %s89 = sphi 0, %s88
      %s103 = sphi 0, %s89
      %s107 = sphi 0, %s107
      %s109 = sphi 0, %s107
      %s110 = sphi 0, %s109
      %s124 = sphi 0, %s110
      %s128 = sphi 0, %s128
      %s130 = sphi 0, %s128
      %s131 = sphi 0, %s130
      %s145 = sphi 0, %s131
      %s149 = sphi 0, %s149
      %s151 = sphi 0, %s149
      %s152 = sphi 0, %s151
      %s166 = sphi 0, %s152
      %s170 = sphi 0, %s170
      %s172 = sphi 0, %s170
      %s173 = sphi 0, %s172
      %s187 = sphi 0, %s173
      %s193 = sphi 0, %s195
      %s196 = sphi 0, %s193
      %s197 = sphi 0, %s196
      %s213 = sphi 0, %s197
    $region4: #{tpu_custom_call.1} parent=1 // loop_header_branch
      %20 = sbr.rel (%p18) target = $region8
    $region5: #{tpu_custom_call.1} parent=1 // loop_body
      %s22 = ssub.s32 %s17, 1
      %s23 = ssub.s32 %s17, 2
      %s30 = sadd.s32 1, %s25
      %p31 = scmp.ge.s32.totalorder %s30, 2
      %s32 = scalar_select %p31, 0, %s30
      %s33 = sadd.s32 1, %s24
      %s34 = scalar_select %p31, %s33, %s24
      %p35 = scmp.ge.s32.totalorder %s34, 1
      %s36 = scalar_select %p35, 0, %s34
      %s37 = ssub.s32 %s24, %s36
      %s38 = ssub.s32 %s25, %s32
      %s39 = sor.u32 %s37, %s38
      %p40 = scmp.eq.s32.totalorder %s39, 0
      %s42 = sadd.s32 %s41, 1
      %s43 = scalar_select %p40, %s41, %s42
      %p46 = pneg %p40
      %p47 = scmp.eq.s32.totalorder %s17, 1
      %p48 = por %p46, %p47
      %p49 = scmp.ne.s32.totalorder %s41, %s44
      %p50 = scmp.eq.s32.totalorder %s17, 0
      %p51 = por %p49, %p50
      %p52 = scmp.ne.s32.totalorder %s41, %s44
      %p53 = scmp.eq.s32.totalorder %s22, 1
      %p54 = por %p52, %p53
      %p55 = scmp.ne.s32.totalorder %s44, %s45
      %p56 = scmp.eq.s32.totalorder %s22, 0
      %p57 = por %p55, %p56
      %p58 = scmp.ne.s32.totalorder %s44, %s45
      %p59 = scmp.eq.s32.totalorder %s23, 1
      %p60 = por %p58, %p59
      %p62 = scmp.ne.s32.totalorder %s45, %s61
      %p63 = scmp.eq.s32.totalorder %s23, 0
      %p64 = por %p62, %p63
      %s66 = sadd.s32 %s65, 1
      %p69 = scmp.eq.s32.totalorder %s17, 1
      %p70 = scmp.ne.s32.totalorder %s65, %s67
      %p71 = scmp.eq.s32.totalorder %s17, 0
      %p72 = por %p70, %p71
      %p73 = scmp.ne.s32.totalorder %s65, %s67
      %p74 = scmp.eq.s32.totalorder %s22, 1
      %p75 = por %p73, %p74
      %p76 = scmp.ne.s32.totalorder %s67, %s68
      %p77 = scmp.eq.s32.totalorder %s22, 0
      %p78 = por %p76, %p77
      %p79 = scmp.ne.s32.totalorder %s67, %s68
      %p80 = scmp.eq.s32.totalorder %s23, 1
      %p81 = por %p79, %p80
      %p83 = scmp.ne.s32.totalorder %s68, %s82
      %p84 = scmp.eq.s32.totalorder %s23, 0
      %p85 = por %p83, %p84
      %s87 = sadd.s32 %s86, 1
      %p90 = scmp.eq.s32.totalorder %s17, 1
      %p91 = scmp.ne.s32.totalorder %s86, %s88
      %p92 = scmp.eq.s32.totalorder %s17, 0
      %p93 = por %p91, %p92
      %p94 = scmp.ne.s32.totalorder %s86, %s88
      %p95 = scmp.eq.s32.totalorder %s22, 1
      %p96 = por %p94, %p95
      %p97 = scmp.ne.s32.totalorder %s88, %s89
      %p98 = scmp.eq.s32.totalorder %s22, 0
      %p99 = por %p97, %p98
      %p100 = scmp.ne.s32.totalorder %s88, %s89
      %p101 = scmp.eq.s32.totalorder %s23, 1
      %p102 = por %p100, %p101
      %p104 = scmp.ne.s32.totalorder %s89, %s103
      %p105 = scmp.eq.s32.totalorder %s23, 0
      %p106 = por %p104, %p105
      %s108 = sadd.s32 %s107, 1
      %p111 = scmp.eq.s32.totalorder %s17, 1
      %p112 = scmp.ne.s32.totalorder %s107, %s109
      %p113 = scmp.eq.s32.totalorder %s17, 0
      %p114 = por %p112, %p113
      %p115 = scmp.ne.s32.totalorder %s107, %s109
      %p116 = scmp.eq.s32.totalorder %s22, 1
      %p117 = por %p115, %p116
      %p118 = scmp.ne.s32.totalorder %s109, %s110
      %p119 = scmp.eq.s32.totalorder %s22, 0
      %p120 = por %p118, %p119
      %p121 = scmp.ne.s32.totalorder %s109, %s110
      %p122 = scmp.eq.s32.totalorder %s23, 1
      %p123 = por %p121, %p122
      %p125 = scmp.ne.s32.totalorder %s110, %s124
      %p126 = scmp.eq.s32.totalorder %s23, 0
      %p127 = por %p125, %p126
      %s129 = sadd.s32 %s128, 1
      %p132 = scmp.eq.s32.totalorder %s17, 1
      %p133 = scmp.ne.s32.totalorder %s128, %s130
      %p134 = scmp.eq.s32.totalorder %s17, 0
      %p135 = por %p133, %p134
      %p136 = scmp.ne.s32.totalorder %s128, %s130
      %p137 = scmp.eq.s32.totalorder %s22, 1
      %p138 = por %p136, %p137
      %p139 = scmp.ne.s32.totalorder %s130, %s131
      %p140 = scmp.eq.s32.totalorder %s22, 0
      %p141 = por %p139, %p140
      %p142 = scmp.ne.s32.totalorder %s130, %s131
      %p143 = scmp.eq.s32.totalorder %s23, 1
      %p144 = por %p142, %p143
      %p146 = scmp.ne.s32.totalorder %s131, %s145
      %p147 = scmp.eq.s32.totalorder %s23, 0
      %p148 = por %p146, %p147
      %s150 = sadd.s32 %s149, 1
      %p153 = scmp.eq.s32.totalorder %s17, 1
      %p154 = scmp.ne.s32.totalorder %s149, %s151
      %p155 = scmp.eq.s32.totalorder %s17, 0
      %p156 = por %p154, %p155
      %p157 = scmp.ne.s32.totalorder %s149, %s151
      %p158 = scmp.eq.s32.totalorder %s22, 1
      %p159 = por %p157, %p158
      %p160 = scmp.ne.s32.totalorder %s151, %s152
      %p161 = scmp.eq.s32.totalorder %s22, 0
      %p162 = por %p160, %p161
      %p163 = scmp.ne.s32.totalorder %s151, %s152
      %p164 = scmp.eq.s32.totalorder %s23, 1
      %p165 = por %p163, %p164
      %p167 = scmp.ne.s32.totalorder %s152, %s166
      %p168 = scmp.eq.s32.totalorder %s23, 0
      %p169 = por %p167, %p168
      %s171 = sadd.s32 %s170, 1
      %p174 = scmp.eq.s32.totalorder %s17, 1
      %p175 = scmp.ne.s32.totalorder %s170, %s172
      %p176 = scmp.eq.s32.totalorder %s17, 0
      %p177 = por %p175, %p176
      %p178 = scmp.ne.s32.totalorder %s170, %s172
      %p179 = scmp.eq.s32.totalorder %s22, 1
      %p180 = por %p178, %p179
      %p181 = scmp.ne.s32.totalorder %s172, %s173
      %p182 = scmp.eq.s32.totalorder %s22, 0
      %p183 = por %p181, %p182
      %p184 = scmp.ne.s32.totalorder %s172, %s173
      %p185 = scmp.eq.s32.totalorder %s23, 1
      %p186 = por %p184, %p185
      %p188 = scmp.ne.s32.totalorder %s173, %s187
      %p189 = scmp.eq.s32.totalorder %s23, 0
      %p190 = por %p188, %p189
      %s191 = ssub.s32 %s24, %s36
      %p192 = scmp.eq.s32.totalorder %s191, 0
      %s194 = sadd.s32 %s193, 1
      %s195 = scalar_select %p192, %s193, %s194
      %p198 = pneg %p192
      %p199 = scmp.eq.s32.totalorder %s17, 1
      %p200 = por %p198, %p199
      %p201 = scmp.ne.s32.totalorder %s193, %s196
      %p202 = scmp.eq.s32.totalorder %s17, 0
      %p203 = por %p201, %p202
      %p204 = scmp.ne.s32.totalorder %s193, %s196
      %p205 = scmp.eq.s32.totalorder %s22, 1
      %p206 = por %p204, %p205
      %p207 = scmp.ne.s32.totalorder %s196, %s197
      %p208 = scmp.eq.s32.totalorder %s22, 0
      %p209 = por %p207, %p208
      %p210 = scmp.ne.s32.totalorder %s196, %s197
      %p211 = scmp.eq.s32.totalorder %s23, 1
      %p212 = por %p210, %p211
      %p214 = scmp.ne.s32.totalorder %s197, %s213
      %p215 = scmp.eq.s32.totalorder %s23, 0
      %p216 = por %p214, %p215
      %p217 = scmp.le.s32.totalorder 1, %s17
      %p218 = scmp.lt.s32.totalorder %s17, 3
      %p219 = pnand %p217, %p218
      %p220 = pneg %p219
      // Predicated region
      $region9: #{tpu_custom_call.1} parent=5 // pred_check
        _
      $region10: #{tpu_custom_call.1} parent=5 // pred_check_branch
        %222 = sbr.rel (%p219) target = $region12
      $region11: #{tpu_custom_call.1} parent=5 // pred_region
        %s223 = ssub.s32 %s17, 1
        // Predicated region
        $region13: #{tpu_custom_call.1} parent=11 // pred_check
          %p224 = pneg %p78
        $region14: #{tpu_custom_call.1} parent=11 // pred_check_branch
          %226 = sbr.rel (%p224) target = $region16
        $region15: #{tpu_custom_call.1} parent=11 // pred_region
          %228 = vsyncadd [#allocation6], 0
          %s229 = sshll.u32 %s1, 4
          %s230 = int_to_ptr.hbm [resolvable:$true] %s229
          %s231 = sshll.u32 [#allocation5], 4
          %s232 = int_to_ptr.vmem [resolvable:$true] %s231
          %237 = dma.hbm_to_vmem [thread:$0]  %s230, 8192, %s232, [#allocation6], 512, 512, 32
        $region16: #{tpu_custom_call.1} parent=11 // pred_fallthru
          _
        // Predicated region
        $region17: #{tpu_custom_call.1} parent=11 // pred_check
          %p238 = pneg %p99
        $region18: #{tpu_custom_call.1} parent=11 // pred_check_branch
          %240 = sbr.rel (%p238) target = $region20
        $region19: #{tpu_custom_call.1} parent=11 // pred_region
          _
        $region20: #{tpu_custom_call.1} parent=11 // pred_fallthru
          _
        // Predicated region
        $region21: #{tpu_custom_call.1} parent=11 // pred_check
          %p241 = pneg %p120
        $region22: #{tpu_custom_call.1} parent=11 // pred_check_branch
          %243 = sbr.rel (%p241) target = $region24
        $region23: #{tpu_custom_call.1} parent=11 // pred_region
          %245 = vsyncadd [#allocation8], 0
          %s246 = sshll.u32 %s3, 4
          %s247 = int_to_ptr.hbm [resolvable:$true] %s246
          %s248 = sshll.u32 [#allocation7], 4
          %s249 = int_to_ptr.vmem [resolvable:$true] %s248
          %254 = dma.hbm_to_vmem [thread:$0]  %s247, 16384, %s249, [#allocation8], 256, 256, 16
        $region24: #{tpu_custom_call.1} parent=11 // pred_fallthru
          _
        // Predicated region
        $region25: #{tpu_custom_call.1} parent=11 // pred_check
          %p255 = pneg %p141
        $region26: #{tpu_custom_call.1} parent=11 // pred_check_branch
          %257 = sbr.rel (%p255) target = $region28
        $region27: #{tpu_custom_call.1} parent=11 // pred_region
          _
        $region28: #{tpu_custom_call.1} parent=11 // pred_fallthru
          _
        // Predicated region
        $region29: #{tpu_custom_call.1} parent=11 // pred_check
          %p258 = pneg %p162
        $region30: #{tpu_custom_call.1} parent=11 // pred_check_branch
          %260 = sbr.rel (%p258) target = $region32
        $region31: #{tpu_custom_call.1} parent=11 // pred_region
          _
        $region32: #{tpu_custom_call.1} parent=11 // pred_fallthru
          _
        // Predicated region
        $region33: #{tpu_custom_call.1} parent=11 // pred_check
          %p261 = pneg %p183
        $region34: #{tpu_custom_call.1} parent=11 // pred_check_branch
          %263 = sbr.rel (%p261) target = $region36
        $region35: #{tpu_custom_call.1} parent=11 // pred_region
          _
        $region36: #{tpu_custom_call.1} parent=11 // pred_fallthru
          _
      $region12: #{tpu_custom_call.1} parent=5 // pred_fallthru
        _
      %p264 = scmp.lt.s32.totalorder %s17, 2
      // Predicated region
      $region37: #{tpu_custom_call.1} parent=5 // pred_check
        %p265 = pneg %p264
      $region38: #{tpu_custom_call.1} parent=5 // pred_check_branch
        %267 = sbr.rel (%p265) target = $region40
      $region39: #{tpu_custom_call.1} parent=5 // pred_region
        // Predicated region
        $region41: #{tpu_custom_call.1} parent=39 // pred_check
          %p268 = pneg %p51
        $region42: #{tpu_custom_call.1} parent=39 // pred_check_branch
          %270 = sbr.rel (%p268) target = $region44
        $region43: #{tpu_custom_call.1} parent=39 // pred_region
          %s271 = sand.u32 %s41, 1
          %s272 = sand.u32 %s41, 1
          %s273 = smul.addr %s272, 64
          %s274 = scalar_lea.vmem [#allocation4], %s273
          %s275 = smul.u32 8, %s24
          %s276 = smul.u32 2, %s25
          %s277 = smul.addr %s275, 4
          %s278 = sadd.s32 %s276, %s277
          %s279 = smul.addr %s278, 4
          %s280 = scalar_lea.vmem %s0, %s279
          // Predicated region
          $region45: #{tpu_custom_call.1} parent=43 // pred_check
            _
          $region46: #{tpu_custom_call.1} parent=43 // pred_check_branch
            %282 = sbr.rel (0) target = $region48
          $region47: #{tpu_custom_call.1} parent=43 // pred_region
            // Predicated region
            $region49: #{tpu_custom_call.1} parent=47 // pred_check
              _
            $region50: #{tpu_custom_call.1} parent=47 // pred_check_branch
              %284 = sbr.rel target = $region52
            $region51: #{tpu_custom_call.1} parent=47 // pred_region
              // Predicated region
              $region64: #{tpu_custom_call.1} parent=51 // pred_check
                _
              $region65: #{tpu_custom_call.1} parent=51 // pred_check_branch
                %330 = sbr.rel (0) target = $region67
              $region66: #{tpu_custom_call.1} parent=51 // pred_region
                loop: start=0, step=1, limit=1
                $region68: #{tpu_custom_call.1} parent=66 // loop_pre_header
                  _
                $region69: #{tpu_custom_call.1} parent=66 // loop_header
                  %s332 = sphi 0, %s336
                  %p333 = scmp.ge.s32.totalorder %s332, 1
                  %s337 = sphi %s280, %s280
                  %s338 = sphi %s274, %s274
                $region70: #{tpu_custom_call.1} parent=66 // loop_header_branch
                  %335 = sbr.rel (%p333) target = $region74
                $region71: #{tpu_custom_call.1} parent=66 // loop_body
                  _
                $region72: #{tpu_custom_call.1} parent=66 // loop_footer
                  %s336 = sadd.s32 1, %s332
                $region73: #{tpu_custom_call.1} parent=66 // loop_footer_branch
                  %331 = sbr.rel target = $region69
                $region74: #{tpu_custom_call.1} parent=66 // loop_exit
                  _
                %s340 = ssub.s32 16, 1
                loop: start=0, step=1, limit=1
                $region75: #{tpu_custom_call.1} parent=66 // loop_pre_header
                  _
                $region76: #{tpu_custom_call.1} parent=66 // loop_header
                  %s342 = sphi 0, %s346
                  %p343 = scmp.ge.s32.totalorder %s342, 1
                  %s347 = sphi %s280, %s280
                  %s348 = sphi %s274, %s274
                $region77: #{tpu_custom_call.1} parent=66 // loop_header_branch
                  %345 = sbr.rel (%p343) target = $region81
                $region78: #{tpu_custom_call.1} parent=66 // loop_body
                  %v349 = vld [vmem:[%s347] sm:%s340]
                  %350 = vst [vmem:[%s348] sm:%s340] %v349
                  %v351 = vld [vmem:[%s347 + $0x4] sm:%s340]
                  %352 = vst [vmem:[%s348 + $0x4] sm:%s340] %v351
                  %v353 = vld [vmem:[%s347 + $0x10] sm:%s340]
                  %354 = vst [vmem:[%s348 + $0x8] sm:%s340] %v353
                  %v355 = vld [vmem:[%s347 + $0x14] sm:%s340]
                  %356 = vst [vmem:[%s348 + $0xc] sm:%s340] %v355
                  %v357 = vld [vmem:[%s347 + $0x20] sm:%s340]
                  %358 = vst [vmem:[%s348 + $0x10] sm:%s340] %v357
                  %v359 = vld [vmem:[%s347 + $0x24] sm:%s340]
                  %360 = vst [vmem:[%s348 + $0x14] sm:%s340] %v359
                  %v361 = vld [vmem:[%s347 + $0x30] sm:%s340]
                  %362 = vst [vmem:[%s348 + $0x18] sm:%s340] %v361
                  %v363 = vld [vmem:[%s347 + $0x34] sm:%s340]
                  %364 = vst [vmem:[%s348 + $0x1c] sm:%s340] %v363
                  %v365 = vld [vmem:[%s347 + $0x40] sm:%s340]
                  %366 = vst [vmem:[%s348 + $0x20] sm:%s340] %v365
                  %v367 = vld [vmem:[%s347 + $0x44] sm:%s340]
                  %368 = vst [vmem:[%s348 + $0x24] sm:%s340] %v367
                  %v369 = vld [vmem:[%s347 + $0x50] sm:%s340]
                  %370 = vst [vmem:[%s348 + $0x28] sm:%s340] %v369
                  %v371 = vld [vmem:[%s347 + $0x54] sm:%s340]
                  %372 = vst [vmem:[%s348 + $0x2c] sm:%s340] %v371
                  %v373 = vld [vmem:[%s347 + $0x60] sm:%s340]
                  %374 = vst [vmem:[%s348 + $0x30] sm:%s340] %v373
                  %v375 = vld [vmem:[%s347 + $0x64] sm:%s340]
                  %376 = vst [vmem:[%s348 + $0x34] sm:%s340] %v375
                  %v377 = vld [vmem:[%s347 + $0x70] sm:%s340]
                  %378 = vst [vmem:[%s348 + $0x38] sm:%s340] %v377
                  %v379 = vld [vmem:[%s347 + $0x74] sm:%s340]
                  %380 = vst [vmem:[%s348 + $0x3c] sm:%s340] %v379
                $region79: #{tpu_custom_call.1} parent=66 // loop_footer
                  %s346 = sadd.s32 1, %s342
                $region80: #{tpu_custom_call.1} parent=66 // loop_footer_branch
                  %341 = sbr.rel target = $region76
                $region81: #{tpu_custom_call.1} parent=66 // loop_exit
                  _
              $region67: #{tpu_custom_call.1} parent=51 // pred_fallthru
                _
            $region52: #{tpu_custom_call.1} parent=47 // pred_fallthru
              _
            // Predicated region
            $region53: #{tpu_custom_call.1} parent=47 // pred_check
              _
            $region54: #{tpu_custom_call.1} parent=47 // pred_check_branch
              %286 = sbr.rel (0) target = $region56
            $region55: #{tpu_custom_call.1} parent=47 // pred_region
              %s288 = ssub.s32 16, 1
              loop: start=0, step=1, limit=1
              $region57: #{tpu_custom_call.1} parent=55 // loop_pre_header
                _
              $region58: #{tpu_custom_call.1} parent=55 // loop_header
                %s290 = sphi 0, %s294
                %p291 = scmp.ge.s32.totalorder %s290, 1
                %s295 = sphi %s280, %s280
                %s296 = sphi %s274, %s274
              $region59: #{tpu_custom_call.1} parent=55 // loop_header_branch
                %293 = sbr.rel (%p291) target = $region63
              $region60: #{tpu_custom_call.1} parent=55 // loop_body
                %v297 = vld [vmem:[%s295] sm:%s288]
                %298 = vst [vmem:[%s296] sm:%s288] %v297
                %v299 = vld [vmem:[%s295 + $0x4] sm:%s288]
                %300 = vst [vmem:[%s296 + $0x4] sm:%s288] %v299
                %v301 = vld [vmem:[%s295 + $0x10] sm:%s288]
                %302 = vst [vmem:[%s296 + $0x8] sm:%s288] %v301
                %v303 = vld [vmem:[%s295 + $0x14] sm:%s288]
                %304 = vst [vmem:[%s296 + $0xc] sm:%s288] %v303
                %v305 = vld [vmem:[%s295 + $0x20] sm:%s288]
                %306 = vst [vmem:[%s296 + $0x10] sm:%s288] %v305
                %v307 = vld [vmem:[%s295 + $0x24] sm:%s288]
                %308 = vst [vmem:[%s296 + $0x14] sm:%s288] %v307
                %v309 = vld [vmem:[%s295 + $0x30] sm:%s288]
                %310 = vst [vmem:[%s296 + $0x18] sm:%s288] %v309
                %v311 = vld [vmem:[%s295 + $0x34] sm:%s288]
                %312 = vst [vmem:[%s296 + $0x1c] sm:%s288] %v311
                %v313 = vld [vmem:[%s295 + $0x40] sm:%s288]
                %314 = vst [vmem:[%s296 + $0x20] sm:%s288] %v313
                %v315 = vld [vmem:[%s295 + $0x44] sm:%s288]
                %316 = vst [vmem:[%s296 + $0x24] sm:%s288] %v315
                %v317 = vld [vmem:[%s295 + $0x50] sm:%s288]
                %318 = vst [vmem:[%s296 + $0x28] sm:%s288] %v317
                %v319 = vld [vmem:[%s295 + $0x54] sm:%s288]
                %320 = vst [vmem:[%s296 + $0x2c] sm:%s288] %v319
                %v321 = vld [vmem:[%s295 + $0x60] sm:%s288]
                %322 = vst [vmem:[%s296 + $0x30] sm:%s288] %v321
                %v323 = vld [vmem:[%s295 + $0x64] sm:%s288]
                %324 = vst [vmem:[%s296 + $0x34] sm:%s288] %v323
                %v325 = vld [vmem:[%s295 + $0x70] sm:%s288]
                %326 = vst [vmem:[%s296 + $0x38] sm:%s288] %v325
                %v327 = vld [vmem:[%s295 + $0x74] sm:%s288]
                %328 = vst [vmem:[%s296 + $0x3c] sm:%s288] %v327
              $region61: #{tpu_custom_call.1} parent=55 // loop_footer
                %s294 = sadd.s32 1, %s290
              $region62: #{tpu_custom_call.1} parent=55 // loop_footer_branch
                %289 = sbr.rel target = $region58
              $region63: #{tpu_custom_call.1} parent=55 // loop_exit
                _
            $region56: #{tpu_custom_call.1} parent=47 // pred_fallthru
              _
          $region48: #{tpu_custom_call.1} parent=43 // pred_fallthru
            _
          %381 = vnop
        $region44: #{tpu_custom_call.1} parent=39 // pred_fallthru
          _
      $region40: #{tpu_custom_call.1} parent=5 // pred_fallthru
        _
      %p382 = scmp.le.s32.totalorder 1, %s17
      %p383 = scmp.lt.s32.totalorder %s17, 3
      %p384 = pnand %p382, %p383
      %p385 = pneg %p384
      // Predicated region
      $region82: #{tpu_custom_call.1} parent=5 // pred_check
        _
      $region83: #{tpu_custom_call.1} parent=5 // pred_check_branch
        %387 = sbr.rel (%p384) target = $region85
      $region84: #{tpu_custom_call.1} parent=5 // pred_region
        %s388 = ssub.s32 %s17, 1
        %s389 = sand.u32 %s44, 1
        %s390 = sand.u32 %s44, 1
        %s391 = smul.addr %s390, 64
        %s392 = scalar_lea.vmem [#allocation4], %s391
        // Predicated region
        $region86: #{tpu_custom_call.1} parent=84 // pred_check
          %p393 = pneg %p57
        $region87: #{tpu_custom_call.1} parent=84 // pred_check_branch
          %395 = sbr.rel (%p393) target = $region89
        $region88: #{tpu_custom_call.1} parent=84 // pred_region
          _
        $region89: #{tpu_custom_call.1} parent=84 // pred_fallthru
          _
        // Predicated region
        $region90: #{tpu_custom_call.1} parent=84 // pred_check
          %p396 = pneg %p78
        $region91: #{tpu_custom_call.1} parent=84 // pred_check_branch
          %398 = sbr.rel (%p396) target = $region93
        $region92: #{tpu_custom_call.1} parent=84 // pred_region
          %400 = dma.done [#allocation6], 8192
        $region93: #{tpu_custom_call.1} parent=84 // pred_fallthru
          _
        // Predicated region
        $region94: #{tpu_custom_call.1} parent=84 // pred_check
          %p401 = pneg %p120
        $region95: #{tpu_custom_call.1} parent=84 // pred_check_branch
          %403 = sbr.rel (%p401) target = $region97
        $region96: #{tpu_custom_call.1} parent=84 // pred_region
          %405 = dma.done [#allocation8], 16384
        $region97: #{tpu_custom_call.1} parent=84 // pred_fallthru
          _
        %s406 = sand.u32 %s44, 1
        %s407 = sand.u32 %s44, 1
        %s408 = smul.addr %s407, 64
        %s409 = scalar_lea.vmem [#allocation4], %s408
        %p410 = pneg %p57
        %p411 = pneg %p54
        %p412 = pneg %p78
        %p413 = pneg %p75
        %p414 = pneg %p99
        %p415 = pneg %p96
        %p416 = pneg %p120
        %p417 = pneg %p117
        %p418 = pneg %p141
        %p419 = pneg %p138
        %p420 = pneg %p162
        %p421 = pneg %p159
        %p422 = pneg %p183
        %p423 = pneg %p180
        %p424 = pneg %p209
        %p425 = pneg %p206
        %p426 = scmp.lt.s32.totalorder %s26, 0
        %s427 = scalar_select %p426, %s26, 0
        %s428 = smul.addr %s427, 8
        %s429 = scalar_lea.vmem %s7, %s428
        %s430 = smul.u32 8, %s26
        %s431 = smul.u32 2, %s27
        %p432 = scmp.lt.s32.totalorder %s26, 0
        %s433 = scalar_select %p432, %s26, 0
        %s434 = smul.addr %s433, 8
        %s435 = scalar_lea.vmem %s7, %s434
        %p436 = scmp.eq.s32.totalorder %s27, 0
        // Predicated region
        $region98: #{tpu_custom_call.1} parent=84 // pred_check
          %p437 = pneg %p436
        $region99: #{tpu_custom_call.1} parent=84 // pred_check_branch
          %439 = sbr.rel (%p437) target = $region101
        $region100: #{tpu_custom_call.1} parent=84 // pred_region
          %440 = vst [vmem:[#allocation2] sm:$0xff] 0.0
        $region101: #{tpu_custom_call.1} parent=84 // pred_fallthru
          _
        %v441 = vld [vmem:[#allocation2] sm:$0xff]
        %v442 = vld [vmem:[%s392] sm:$0xf]
        %v443 = vld [vmem:[%s392 + $0x4] sm:$0xf]
        %v444 = vld [vmem:[%s392 + $0x8] sm:$0xf]
        %v445 = vld [vmem:[%s392 + $0xc] sm:$0xf]
        %v446 = vld [vmem:[%s392 + $0x10] sm:$0xf]
        %v447 = vld [vmem:[%s392 + $0x14] sm:$0xf]
        %v448 = vld [vmem:[%s392 + $0x18] sm:$0xf]
        %v449 = vld [vmem:[%s392 + $0x1c] sm:$0xf]
        %v450 = vld [vmem:[%s392 + $0x20] sm:$0xf]
        %v451 = vld [vmem:[%s392 + $0x24] sm:$0xf]
        %v452 = vld [vmem:[%s392 + $0x28] sm:$0xf]
        %v453 = vld [vmem:[%s392 + $0x2c] sm:$0xf]
        %v454 = vld [vmem:[%s392 + $0x30] sm:$0xf]
        %v455 = vld [vmem:[%s392 + $0x34] sm:$0xf]
        %v456 = vld [vmem:[%s392 + $0x38] sm:$0xf]
        %v457 = vld [vmem:[%s392 + $0x3c] sm:$0xf]
        %v458 = vunpack.c.l.bf16 %v442
        %v459 = vunpack.c.l.bf16 %v443
        %v460 = vunpack.c.l.bf16 %v444
        %v461 = vunpack.c.l.bf16 %v445
        %v462 = vunpack.c.l.bf16 %v446
        %v463 = vunpack.c.l.bf16 %v447
        %v464 = vunpack.c.l.bf16 %v448
        %v465 = vunpack.c.l.bf16 %v449
        %v466 = vunpack.c.l.bf16 %v450
        %v467 = vunpack.c.l.bf16 %v451
        %v468 = vunpack.c.l.bf16 %v452
        %v469 = vunpack.c.l.bf16 %v453
        %v470 = vunpack.c.l.bf16 %v454
        %v471 = vunpack.c.l.bf16 %v455
        %v472 = vunpack.c.l.bf16 %v456
        %v473 = vunpack.c.l.bf16 %v457
        %v474 = vadd.f32 %v458, %v459
        %v475 = vrot.slane %v474, 4
        %v476 = vadd.f32 %v474, %v475
        %v477 = vrot.slane %v476, 2
        %v478 = vadd.f32 %v476, %v477
        %v479 = vrot.slane %v478, 1
        %v480 = vadd.f32 %v478, %v479
        %v481 = vadd.f32 %v460, %v461
        %v482 = vrot.slane %v481, 4
        %v483 = vadd.f32 %v481, %v482
        %v484 = vrot.slane %v483, 2
        %v485 = vadd.f32 %v483, %v484
        %v486 = vrot.slane %v485, 1
        %v487 = vadd.f32 %v485, %v486
        %v488 = vadd.f32 %v462, %v463
        %v489 = vrot.slane %v488, 4
        %v490 = vadd.f32 %v488, %v489
        %v491 = vrot.slane %v490, 2
        %v492 = vadd.f32 %v490, %v491
        %v493 = vrot.slane %v492, 1
        %v494 = vadd.f32 %v492, %v493
        %v495 = vadd.f32 %v464, %v465
        %v496 = vrot.slane %v495, 4
        %v497 = vadd.f32 %v495, %v496
        %v498 = vrot.slane %v497, 2
        %v499 = vadd.f32 %v497, %v498
        %v500 = vrot.slane %v499, 1
        %v501 = vadd.f32 %v499, %v500
        %v502 = vadd.f32 %v466, %v467
        %v503 = vrot.slane %v502, 4
        %v504 = vadd.f32 %v502, %v503
        %v505 = vrot.slane %v504, 2
        %v506 = vadd.f32 %v504, %v505
        %v507 = vrot.slane %v506, 1
        %v508 = vadd.f32 %v506, %v507
        %v509 = vadd.f32 %v468, %v469
        %v510 = vrot.slane %v509, 4
        %v511 = vadd.f32 %v509, %v510
        %v512 = vrot.slane %v511, 2
        %v513 = vadd.f32 %v511, %v512
        %v514 = vrot.slane %v513, 1
        %v515 = vadd.f32 %v513, %v514
        %v516 = vadd.f32 %v470, %v471
        %v517 = vrot.slane %v516, 4
        %v518 = vadd.f32 %v516, %v517
        %v519 = vrot.slane %v518, 2
        %v520 = vadd.f32 %v518, %v519
        %v521 = vrot.slane %v520, 1
        %v522 = vadd.f32 %v520, %v521
        %v523 = vadd.f32 %v472, %v473
        %v524 = vrot.slane %v523, 4
        %v525 = vadd.f32 %v523, %v524
        %v526 = vrot.slane %v525, 2
        %v527 = vadd.f32 %v525, %v526
        %v528 = vrot.slane %v527, 1
        %v529 = vadd.f32 %v527, %v528
        %vm538 = vcmask 1041409
        %v539 = vsel %vm538, %v487, %v480
        %vm540 = vcmask 1042434
        %v541 = vsel %vm540, %v494, %v539
        %vm542 = vcmask 1043459
        %v543 = vsel %vm542, %v501, %v541
        %vm544 = vcmask 1044484
        %v545 = vsel %vm544, %v508, %v543
        %vm546 = vcmask 1045509
        %v547 = vsel %vm546, %v515, %v545
        %vm548 = vcmask 1046534
        %v549 = vsel %vm548, %v522, %v547
        %vm550 = vcmask 1047559
        %v551 = vsel %vm550, %v529, %v549
        %v553 = vadd.f32 %v441, %v551
        %554 = vst [vmem:[#allocation2] sm:$0xff] %v553
        %p555 = scmp.eq.s32.totalorder %s27, 1
        // Predicated region
        $region102: #{tpu_custom_call.1} parent=84 // pred_check
          %p556 = pneg %p555
        $region103: #{tpu_custom_call.1} parent=84 // pred_check_branch
          %558 = sbr.rel (%p556) target = $region105
        $region104: #{tpu_custom_call.1} parent=84 // pred_region
          %v559 = vld [vmem:[#allocation2] sm:$0xff]
          %v560 = vmul.f32 %v559, 0.041666668
          %v561 = vld [vmem:[#allocation5] sm:$0xff]
          %v562 = vld [vmem:[#allocation5 + $0x8] sm:$0xff]
          %v563 = vld [vmem:[#allocation5 + $0x10] sm:$0xff]
          %v564 = vld [vmem:[#allocation5 + $0x18] sm:$0xff]
          %v565 = vld [vmem:[#allocation5 + $0x20] sm:$0xff]
          %v566 = vld [vmem:[#allocation5 + $0x28] sm:$0xff]
          %v567 = vld [vmem:[#allocation5 + $0x30] sm:$0xff]
          %v568 = vld [vmem:[#allocation5 + $0x38] sm:$0xff]
          %v569 = vld [vmem:[#allocation5 + $0x40] sm:$0xff]
          %v570 = vld [vmem:[#allocation5 + $0x48] sm:$0xff]
          %v571 = vld [vmem:[#allocation5 + $0x50] sm:$0xff]
          %v572 = vld [vmem:[#allocation5 + $0x58] sm:$0xff]
          %v573 = vld [vmem:[#allocation5 + $0x60] sm:$0xff]
          %v574 = vld [vmem:[#allocation5 + $0x68] sm:$0xff]
          %v575 = vld [vmem:[#allocation5 + $0x70] sm:$0xff]
          %v576 = vld [vmem:[#allocation5 + $0x78] sm:$0xff]
          %v577 = vld [vmem:[#allocation5 + $0x80] sm:$0xff]
          %v578 = vld [vmem:[#allocation5 + $0x88] sm:$0xff]
          %v579 = vld [vmem:[#allocation5 + $0x90] sm:$0xff]
          %v580 = vld [vmem:[#allocation5 + $0x98] sm:$0xff]
          %v581 = vld [vmem:[#allocation5 + $0xa0] sm:$0xff]
          %v582 = vld [vmem:[#allocation5 + $0xa8] sm:$0xff]
          %v583 = vld [vmem:[#allocation5 + $0xb0] sm:$0xff]
          %v584 = vld [vmem:[#allocation5 + $0xb8] sm:$0xff]
          %v585 = vld [vmem:[#allocation5 + $0xc0] sm:$0xff]
          %v586 = vld [vmem:[#allocation5 + $0xc8] sm:$0xff]
          %v587 = vld [vmem:[#allocation5 + $0xd0] sm:$0xff]
          %v588 = vld [vmem:[#allocation5 + $0xd8] sm:$0xff]
          %v589 = vld [vmem:[#allocation5 + $0xe0] sm:$0xff]
          %v590 = vld [vmem:[#allocation5 + $0xe8] sm:$0xff]
          %v591 = vld [vmem:[#allocation5 + $0xf0] sm:$0xff]
          %v592 = vld [vmem:[#allocation5 + $0xf8] sm:$0xff]
          %v593 = vld [vmem:[#allocation5 + $0x100] sm:$0xff]
          %v594 = vld [vmem:[#allocation5 + $0x108] sm:$0xff]
          %v595 = vld [vmem:[#allocation5 + $0x110] sm:$0xff]
          %v596 = vld [vmem:[#allocation5 + $0x118] sm:$0xff]
          %v597 = vld [vmem:[#allocation5 + $0x120] sm:$0xff]
          %v598 = vld [vmem:[#allocation5 + $0x128] sm:$0xff]
          %v599 = vld [vmem:[#allocation5 + $0x130] sm:$0xff]
          %v600 = vld [vmem:[#allocation5 + $0x138] sm:$0xff]
          %v601 = vld [vmem:[#allocation5 + $0x140] sm:$0xff]
          %v602 = vld [vmem:[#allocation5 + $0x148] sm:$0xff]
          %v603 = vld [vmem:[#allocation5 + $0x150] sm:$0xff]
          %v604 = vld [vmem:[#allocation5 + $0x158] sm:$0xff]
          %v605 = vld [vmem:[#allocation5 + $0x160] sm:$0xff]
          %v606 = vld [vmem:[#allocation5 + $0x168] sm:$0xff]
          %v607 = vld [vmem:[#allocation5 + $0x170] sm:$0xff]
          %v608 = vld [vmem:[#allocation5 + $0x178] sm:$0xff]
          %v609 = vld [vmem:[#allocation5 + $0x180] sm:$0xff]
          %v610 = vld [vmem:[#allocation5 + $0x188] sm:$0xff]
          %v611 = vld [vmem:[#allocation5 + $0x190] sm:$0xff]
          %v612 = vld [vmem:[#allocation5 + $0x198] sm:$0xff]
          %v613 = vld [vmem:[#allocation5 + $0x1a0] sm:$0xff]
          %v614 = vld [vmem:[#allocation5 + $0x1a8] sm:$0xff]
          %v615 = vld [vmem:[#allocation5 + $0x1b0] sm:$0xff]
          %v616 = vld [vmem:[#allocation5 + $0x1b8] sm:$0xff]
          %v617 = vld [vmem:[#allocation5 + $0x1c0] sm:$0xff]
          %v618 = vld [vmem:[#allocation5 + $0x1c8] sm:$0xff]
          %v619 = vld [vmem:[#allocation5 + $0x1d0] sm:$0xff]
          %v620 = vld [vmem:[#allocation5 + $0x1d8] sm:$0xff]
          %v621 = vld [vmem:[#allocation5 + $0x1e0] sm:$0xff]
          %v622 = vld [vmem:[#allocation5 + $0x1e8] sm:$0xff]
          %v623 = vld [vmem:[#allocation5 + $0x1f0] sm:$0xff]
          %v624 = vld [vmem:[#allocation5 + $0x1f8] sm:$0xff]
          %v625 = vld [vmem:[%s2] sm:$0xf]
          %v627 = vperm.slane %v625, 0
          %v628 = vperm.slane %v625, 1
          %v629 = vperm.slane %v625, 2
          %v630 = vperm.slane %v625, 3
          %635 = vmatpush.msra.mxu0 %v621
          %636 = vmatpush.msra.mxu0 %v617
          %637 = vmatpush.msra.mxu0 %v613
          %638 = vmatpush.msra.mxu0 %v609
          %639 = vmatpush.msra.mxu0 %v605
          %640 = vmatpush.msra.mxu0 %v601
          %641 = vmatpush.msra.mxu0 %v597
          %642 = vmatpush.msra.mxu0 %v593
          %643 = vmatpush.msra.mxu0 %v589
          %644 = vmatpush.msra.mxu0 %v585
          %645 = vmatpush.msra.mxu0 %v581
          %646 = vmatpush.msra.mxu0 %v577
          %647 = vmatpush.msra.mxu0 %v573
          %648 = vmatpush.msra.mxu0 %v569
          %649 = vmatpush.msra.mxu0 %v565
          %650 = vmatpush.msra.mxu0 %v561
          %651 = vmatmul.f32.gmra.mxu0 %v560
          %v652 = vpop.f32.mrf.mxu0
          %v653 = vadd.f32 %v627, %v652
          %654 = vdwg.mxu0
          %655 = vmatpush.msra.mxu0 %v622
          %656 = vmatpush.msra.mxu0 %v618
          %657 = vmatpush.msra.mxu0 %v614
          %658 = vmatpush.msra.mxu0 %v610
          %659 = vmatpush.msra.mxu0 %v606
          %660 = vmatpush.msra.mxu0 %v602
          %661 = vmatpush.msra.mxu0 %v598
          %662 = vmatpush.msra.mxu0 %v594
          %663 = vmatpush.msra.mxu0 %v590
          %664 = vmatpush.msra.mxu0 %v586
          %665 = vmatpush.msra.mxu0 %v582
          %666 = vmatpush.msra.mxu0 %v578
          %667 = vmatpush.msra.mxu0 %v574
          %668 = vmatpush.msra.mxu0 %v570
          %669 = vmatpush.msra.mxu0 %v566
          %670 = vmatpush.msra.mxu0 %v562
          %671 = vmatmul.f32.gmra.mxu0 %v560
          %v672 = vpop.f32.mrf.mxu0
          %v673 = vadd.f32 %v628, %v672
          %674 = vdwg.mxu0
          %675 = vmatpush.msra.mxu0 %v623
          %676 = vmatpush.msra.mxu0 %v619
          %677 = vmatpush.msra.mxu0 %v615
          %678 = vmatpush.msra.mxu0 %v611
          %679 = vmatpush.msra.mxu0 %v607
          %680 = vmatpush.msra.mxu0 %v603
          %681 = vmatpush.msra.mxu0 %v599
          %682 = vmatpush.msra.mxu0 %v595
          %683 = vmatpush.msra.mxu0 %v591
          %684 = vmatpush.msra.mxu0 %v587
          %685 = vmatpush.msra.mxu0 %v583
          %686 = vmatpush.msra.mxu0 %v579
          %687 = vmatpush.msra.mxu0 %v575
          %688 = vmatpush.msra.mxu0 %v571
          %689 = vmatpush.msra.mxu0 %v567
          %690 = vmatpush.msra.mxu0 %v563
          %691 = vmatmul.f32.gmra.mxu0 %v560
          %v692 = vpop.f32.mrf.mxu0
          %v693 = vadd.f32 %v629, %v692
          %694 = vdwg.mxu0
          %695 = vmatpush.msra.mxu0 %v624
          %696 = vmatpush.msra.mxu0 %v620
          %697 = vmatpush.msra.mxu0 %v616
          %698 = vmatpush.msra.mxu0 %v612
          %699 = vmatpush.msra.mxu0 %v608
          %700 = vmatpush.msra.mxu0 %v604
          %701 = vmatpush.msra.mxu0 %v600
          %702 = vmatpush.msra.mxu0 %v596
          %703 = vmatpush.msra.mxu0 %v592
          %704 = vmatpush.msra.mxu0 %v588
          %705 = vmatpush.msra.mxu0 %v584
          %706 = vmatpush.msra.mxu0 %v580
          %707 = vmatpush.msra.mxu0 %v576
          %708 = vmatpush.msra.mxu0 %v572
          %709 = vmatpush.msra.mxu0 %v568
          %710 = vmatpush.msra.mxu0 %v564
          %711 = vmatmul.f32.gmra.mxu0 %v560
          %v712 = vpop.f32.mrf.mxu0
          %v713 = vadd.f32 %v630, %v712
          %714 = vdwg.mxu0
          %v715 = vmax.f32 %v653, 0.0
          %v716 = vmax.f32 %v673, 0.0
          %v717 = vmax.f32 %v693, 0.0
          %v718 = vmax.f32 %v713, 0.0
          %v719 = vld [vmem:[#allocation7] sm:$0xff]
          %v720 = vld [vmem:[#allocation7 + $0x8] sm:$0xff]
          %v721 = vld [vmem:[#allocation7 + $0x10] sm:$0xff]
          %v722 = vld [vmem:[#allocation7 + $0x18] sm:$0xff]
          %v723 = vld [vmem:[#allocation7 + $0x20] sm:$0xff]
          %v724 = vld [vmem:[#allocation7 + $0x28] sm:$0xff]
          %v725 = vld [vmem:[#allocation7 + $0x30] sm:$0xff]
          %v726 = vld [vmem:[#allocation7 + $0x38] sm:$0xff]
          %v727 = vld [vmem:[#allocation7 + $0x40] sm:$0xff]
          %v728 = vld [vmem:[#allocation7 + $0x48] sm:$0xff]
          %v729 = vld [vmem:[#allocation7 + $0x50] sm:$0xff]
          %v730 = vld [vmem:[#allocation7 + $0x58] sm:$0xff]
          %v731 = vld [vmem:[#allocation7 + $0x60] sm:$0xff]
          %v732 = vld [vmem:[#allocation7 + $0x68] sm:$0xff]
          %v733 = vld [vmem:[#allocation7 + $0x70] sm:$0xff]
          %v734 = vld [vmem:[#allocation7 + $0x78] sm:$0xff]
          %v735 = vld [vmem:[#allocation7 + $0x80] sm:$0xff]
          %v736 = vld [vmem:[#allocation7 + $0x88] sm:$0xff]
          %v737 = vld [vmem:[#allocation7 + $0x90] sm:$0xff]
          %v738 = vld [vmem:[#allocation7 + $0x98] sm:$0xff]
          %v739 = vld [vmem:[#allocation7 + $0xa0] sm:$0xff]
          %v740 = vld [vmem:[#allocation7 + $0xa8] sm:$0xff]
          %v741 = vld [vmem:[#allocation7 + $0xb0] sm:$0xff]
          %v742 = vld [vmem:[#allocation7 + $0xb8] sm:$0xff]
          %v743 = vld [vmem:[#allocation7 + $0xc0] sm:$0xff]
          %v744 = vld [vmem:[#allocation7 + $0xc8] sm:$0xff]
          %v745 = vld [vmem:[#allocation7 + $0xd0] sm:$0xff]
          %v746 = vld [vmem:[#allocation7 + $0xd8] sm:$0xff]
          %v747 = vld [vmem:[#allocation7 + $0xe0] sm:$0xff]
          %v748 = vld [vmem:[#allocation7 + $0xe8] sm:$0xff]
          %v749 = vld [vmem:[#allocation7 + $0xf0] sm:$0xff]
          %v750 = vld [vmem:[#allocation7 + $0xf8] sm:$0xff]
          %v751 = vld [vmem:[#allocation7 + $0x100] sm:$0xff]
          %v752 = vld [vmem:[#allocation7 + $0x108] sm:$0xff]
          %v753 = vld [vmem:[#allocation7 + $0x110] sm:$0xff]
          %v754 = vld [vmem:[#allocation7 + $0x118] sm:$0xff]
          %v755 = vld [vmem:[#allocation7 + $0x120] sm:$0xff]
          %v756 = vld [vmem:[#allocation7 + $0x128] sm:$0xff]
          %v757 = vld [vmem:[#allocation7 + $0x130] sm:$0xff]
          %v758 = vld [vmem:[#allocation7 + $0x138] sm:$0xff]
          %v759 = vld [vmem:[#allocation7 + $0x140] sm:$0xff]
          %v760 = vld [vmem:[#allocation7 + $0x148] sm:$0xff]
          %v761 = vld [vmem:[#allocation7 + $0x150] sm:$0xff]
          %v762 = vld [vmem:[#allocation7 + $0x158] sm:$0xff]
          %v763 = vld [vmem:[#allocation7 + $0x160] sm:$0xff]
          %v764 = vld [vmem:[#allocation7 + $0x168] sm:$0xff]
          %v765 = vld [vmem:[#allocation7 + $0x170] sm:$0xff]
          %v766 = vld [vmem:[#allocation7 + $0x178] sm:$0xff]
          %v767 = vld [vmem:[#allocation7 + $0x180] sm:$0xff]
          %v768 = vld [vmem:[#allocation7 + $0x188] sm:$0xff]
          %v769 = vld [vmem:[#allocation7 + $0x190] sm:$0xff]
          %v770 = vld [vmem:[#allocation7 + $0x198] sm:$0xff]
          %v771 = vld [vmem:[#allocation7 + $0x1a0] sm:$0xff]
          %v772 = vld [vmem:[#allocation7 + $0x1a8] sm:$0xff]
          %v773 = vld [vmem:[#allocation7 + $0x1b0] sm:$0xff]
          %v774 = vld [vmem:[#allocation7 + $0x1b8] sm:$0xff]
          %v775 = vld [vmem:[#allocation7 + $0x1c0] sm:$0xff]
          %v776 = vld [vmem:[#allocation7 + $0x1c8] sm:$0xff]
          %v777 = vld [vmem:[#allocation7 + $0x1d0] sm:$0xff]
          %v778 = vld [vmem:[#allocation7 + $0x1d8] sm:$0xff]
          %v779 = vld [vmem:[#allocation7 + $0x1e0] sm:$0xff]
          %v780 = vld [vmem:[#allocation7 + $0x1e8] sm:$0xff]
          %v781 = vld [vmem:[#allocation7 + $0x1f0] sm:$0xff]
          %v782 = vld [vmem:[#allocation7 + $0x1f8] sm:$0xff]
          %v783 = vld [vmem:[#allocation7 + $0x200] sm:$0xff]
          %v784 = vld [vmem:[#allocation7 + $0x208] sm:$0xff]
          %v785 = vld [vmem:[#allocation7 + $0x210] sm:$0xff]
          %v786 = vld [vmem:[#allocation7 + $0x218] sm:$0xff]
          %v787 = vld [vmem:[#allocation7 + $0x220] sm:$0xff]
          %v788 = vld [vmem:[#allocation7 + $0x228] sm:$0xff]
          %v789 = vld [vmem:[#allocation7 + $0x230] sm:$0xff]
          %v790 = vld [vmem:[#allocation7 + $0x238] sm:$0xff]
          %v791 = vld [vmem:[#allocation7 + $0x240] sm:$0xff]
          %v792 = vld [vmem:[#allocation7 + $0x248] sm:$0xff]
          %v793 = vld [vmem:[#allocation7 + $0x250] sm:$0xff]
          %v794 = vld [vmem:[#allocation7 + $0x258] sm:$0xff]
          %v795 = vld [vmem:[#allocation7 + $0x260] sm:$0xff]
          %v796 = vld [vmem:[#allocation7 + $0x268] sm:$0xff]
          %v797 = vld [vmem:[#allocation7 + $0x270] sm:$0xff]
          %v798 = vld [vmem:[#allocation7 + $0x278] sm:$0xff]
          %v799 = vld [vmem:[#allocation7 + $0x280] sm:$0xff]
          %v800 = vld [vmem:[#allocation7 + $0x288] sm:$0xff]
          %v801 = vld [vmem:[#allocation7 + $0x290] sm:$0xff]
          %v802 = vld [vmem:[#allocation7 + $0x298] sm:$0xff]
          %v803 = vld [vmem:[#allocation7 + $0x2a0] sm:$0xff]
          %v804 = vld [vmem:[#allocation7 + $0x2a8] sm:$0xff]
          %v805 = vld [vmem:[#allocation7 + $0x2b0] sm:$0xff]
          %v806 = vld [vmem:[#allocation7 + $0x2b8] sm:$0xff]
          %v807 = vld [vmem:[#allocation7 + $0x2c0] sm:$0xff]
          %v808 = vld [vmem:[#allocation7 + $0x2c8] sm:$0xff]
          %v809 = vld [vmem:[#allocation7 + $0x2d0] sm:$0xff]
          %v810 = vld [vmem:[#allocation7 + $0x2d8] sm:$0xff]
          %v811 = vld [vmem:[#allocation7 + $0x2e0] sm:$0xff]
          %v812 = vld [vmem:[#allocation7 + $0x2e8] sm:$0xff]
          %v813 = vld [vmem:[#allocation7 + $0x2f0] sm:$0xff]
          %v814 = vld [vmem:[#allocation7 + $0x2f8] sm:$0xff]
          %v815 = vld [vmem:[#allocation7 + $0x300] sm:$0xff]
          %v816 = vld [vmem:[#allocation7 + $0x308] sm:$0xff]
          %v817 = vld [vmem:[#allocation7 + $0x310] sm:$0xff]
          %v818 = vld [vmem:[#allocation7 + $0x318] sm:$0xff]
          %v819 = vld [vmem:[#allocation7 + $0x320] sm:$0xff]
          %v820 = vld [vmem:[#allocation7 + $0x328] sm:$0xff]
          %v821 = vld [vmem:[#allocation7 + $0x330] sm:$0xff]
          %v822 = vld [vmem:[#allocation7 + $0x338] sm:$0xff]
          %v823 = vld [vmem:[#allocation7 + $0x340] sm:$0xff]
          %v824 = vld [vmem:[#allocation7 + $0x348] sm:$0xff]
          %v825 = vld [vmem:[#allocation7 + $0x350] sm:$0xff]
          %v826 = vld [vmem:[#allocation7 + $0x358] sm:$0xff]
          %v827 = vld [vmem:[#allocation7 + $0x360] sm:$0xff]
          %v828 = vld [vmem:[#allocation7 + $0x368] sm:$0xff]
          %v829 = vld [vmem:[#allocation7 + $0x370] sm:$0xff]
          %v830 = vld [vmem:[#allocation7 + $0x378] sm:$0xff]
          %v831 = vld [vmem:[#allocation7 + $0x380] sm:$0xff]
          %v832 = vld [vmem:[#allocation7 + $0x388] sm:$0xff]
          %v833 = vld [vmem:[#allocation7 + $0x390] sm:$0xff]
          %v834 = vld [vmem:[#allocation7 + $0x398] sm:$0xff]
          %v835 = vld [vmem:[#allocation7 + $0x3a0] sm:$0xff]
          %v836 = vld [vmem:[#allocation7 + $0x3a8] sm:$0xff]
          %v837 = vld [vmem:[#allocation7 + $0x3b0] sm:$0xff]
          %v838 = vld [vmem:[#allocation7 + $0x3b8] sm:$0xff]
          %v839 = vld [vmem:[#allocation7 + $0x3c0] sm:$0xff]
          %v840 = vld [vmem:[#allocation7 + $0x3c8] sm:$0xff]
          %v841 = vld [vmem:[#allocation7 + $0x3d0] sm:$0xff]
          %v842 = vld [vmem:[#allocation7 + $0x3d8] sm:$0xff]
          %v843 = vld [vmem:[#allocation7 + $0x3e0] sm:$0xff]
          %v844 = vld [vmem:[#allocation7 + $0x3e8] sm:$0xff]
          %v845 = vld [vmem:[#allocation7 + $0x3f0] sm:$0xff]
          %v846 = vld [vmem:[#allocation7 + $0x3f8] sm:$0xff]
          %v847 = vld [vmem:[%s4] sm:$0x3]
          %v849 = vperm.slane %v847, 0
          %v850 = vperm.slane %v847, 1
          %853 = vmatpush.msra.mxu0 %v749
          %854 = vmatpush.msra.mxu0 %v747
          %855 = vmatpush.msra.mxu0 %v745
          %856 = vmatpush.msra.mxu0 %v743
          %857 = vmatpush.msra.mxu0 %v741
          %858 = vmatpush.msra.mxu0 %v739
          %859 = vmatpush.msra.mxu0 %v737
          %860 = vmatpush.msra.mxu0 %v735
          %861 = vmatpush.msra.mxu0 %v733
          %862 = vmatpush.msra.mxu0 %v731
          %863 = vmatpush.msra.mxu0 %v729
          %864 = vmatpush.msra.mxu0 %v727
          %865 = vmatpush.msra.mxu0 %v725
          %866 = vmatpush.msra.mxu0 %v723
          %867 = vmatpush.msra.mxu0 %v721
          %868 = vmatpush.msra.mxu0 %v719
          %869 = vmatmul.f32.gmra.mxu0 %v715
          %v870 = vpop.f32.mrf.mxu0
          %v871 = vadd.f32 %v849, %v870
          %872 = vdwg.mxu0
          %873 = vmatpush.msra.mxu0 %v781
          %874 = vmatpush.msra.mxu0 %v779
          %875 = vmatpush.msra.mxu0 %v777
          %876 = vmatpush.msra.mxu0 %v775
          %877 = vmatpush.msra.mxu0 %v773
          %878 = vmatpush.msra.mxu0 %v771
          %879 = vmatpush.msra.mxu0 %v769
          %880 = vmatpush.msra.mxu0 %v767
          %881 = vmatpush.msra.mxu0 %v765
          %882 = vmatpush.msra.mxu0 %v763
          %883 = vmatpush.msra.mxu0 %v761
          %884 = vmatpush.msra.mxu0 %v759
          %885 = vmatpush.msra.mxu0 %v757
          %886 = vmatpush.msra.mxu0 %v755
          %887 = vmatpush.msra.mxu0 %v753
          %888 = vmatpush.msra.mxu0 %v751
          %889 = vmatmul.f32.gmra.mxu0 %v716
          %v890 = vpop.f32.mrf.mxu0
          %v891 = vadd.f32 %v871, %v890
          %892 = vdwg.mxu0
          %893 = vmatpush.msra.mxu0 %v813
          %894 = vmatpush.msra.mxu0 %v811
          %895 = vmatpush.msra.mxu0 %v809
          %896 = vmatpush.msra.mxu0 %v807
          %897 = vmatpush.msra.mxu0 %v805
          %898 = vmatpush.msra.mxu0 %v803
          %899 = vmatpush.msra.mxu0 %v801
          %900 = vmatpush.msra.mxu0 %v799
          %901 = vmatpush.msra.mxu0 %v797
          %902 = vmatpush.msra.mxu0 %v795
          %903 = vmatpush.msra.mxu0 %v793
          %904 = vmatpush.msra.mxu0 %v791
          %905 = vmatpush.msra.mxu0 %v789
          %906 = vmatpush.msra.mxu0 %v787
          %907 = vmatpush.msra.mxu0 %v785
          %908 = vmatpush.msra.mxu0 %v783
          %909 = vmatmul.f32.gmra.mxu0 %v717
          %v910 = vpop.f32.mrf.mxu0
          %v911 = vadd.f32 %v891, %v910
          %912 = vdwg.mxu0
          %913 = vmatpush.msra.mxu0 %v845
          %914 = vmatpush.msra.mxu0 %v843
          %915 = vmatpush.msra.mxu0 %v841
          %916 = vmatpush.msra.mxu0 %v839
          %917 = vmatpush.msra.mxu0 %v837
          %918 = vmatpush.msra.mxu0 %v835
          %919 = vmatpush.msra.mxu0 %v833
          %920 = vmatpush.msra.mxu0 %v831
          %921 = vmatpush.msra.mxu0 %v829
          %922 = vmatpush.msra.mxu0 %v827
          %923 = vmatpush.msra.mxu0 %v825
          %924 = vmatpush.msra.mxu0 %v823
          %925 = vmatpush.msra.mxu0 %v821
          %926 = vmatpush.msra.mxu0 %v819
          %927 = vmatpush.msra.mxu0 %v817
          %928 = vmatpush.msra.mxu0 %v815
          %929 = vmatmul.f32.gmra.mxu0 %v718
          %v930 = vpop.f32.mrf.mxu0
          %v931 = vadd.f32 %v911, %v930
          %932 = vdwg.mxu0
          %933 = vmatpush.msra.mxu0 %v750
          %934 = vmatpush.msra.mxu0 %v748
          %935 = vmatpush.msra.mxu0 %v746
          %936 = vmatpush.msra.mxu0 %v744
          %937 = vmatpush.msra.mxu0 %v742
          %938 = vmatpush.msra.mxu0 %v740
          %939 = vmatpush.msra.mxu0 %v738
          %940 = vmatpush.msra.mxu0 %v736
          %941 = vmatpush.msra.mxu0 %v734
          %942 = vmatpush.msra.mxu0 %v732
          %943 = vmatpush.msra.mxu0 %v730
          %944 = vmatpush.msra.mxu0 %v728
          %945 = vmatpush.msra.mxu0 %v726
          %946 = vmatpush.msra.mxu0 %v724
          %947 = vmatpush.msra.mxu0 %v722
          %948 = vmatpush.msra.mxu0 %v720
          %949 = vmatmul.f32.gmra.mxu0 %v715
          %v950 = vpop.f32.mrf.mxu0
          %v951 = vadd.f32 %v850, %v950
          %952 = vdwg.mxu0
          %953 = vmatpush.msra.mxu0 %v782
          %954 = vmatpush.msra.mxu0 %v780
          %955 = vmatpush.msra.mxu0 %v778
          %956 = vmatpush.msra.mxu0 %v776
          %957 = vmatpush.msra.mxu0 %v774
          %958 = vmatpush.msra.mxu0 %v772
          %959 = vmatpush.msra.mxu0 %v770
          %960 = vmatpush.msra.mxu0 %v768
          %961 = vmatpush.msra.mxu0 %v766
          %962 = vmatpush.msra.mxu0 %v764
          %963 = vmatpush.msra.mxu0 %v762
          %964 = vmatpush.msra.mxu0 %v760
          %965 = vmatpush.msra.mxu0 %v758
          %966 = vmatpush.msra.mxu0 %v756
          %967 = vmatpush.msra.mxu0 %v754
          %968 = vmatpush.msra.mxu0 %v752
          %969 = vmatmul.f32.gmra.mxu0 %v716
          %v970 = vpop.f32.mrf.mxu0
          %v971 = vadd.f32 %v951, %v970
          %972 = vdwg.mxu0
          %973 = vmatpush.msra.mxu0 %v814
          %974 = vmatpush.msra.mxu0 %v812
          %975 = vmatpush.msra.mxu0 %v810
          %976 = vmatpush.msra.mxu0 %v808
          %977 = vmatpush.msra.mxu0 %v806
          %978 = vmatpush.msra.mxu0 %v804
          %979 = vmatpush.msra.mxu0 %v802
          %980 = vmatpush.msra.mxu0 %v800
          %981 = vmatpush.msra.mxu0 %v798
          %982 = vmatpush.msra.mxu0 %v796
          %983 = vmatpush.msra.mxu0 %v794
          %984 = vmatpush.msra.mxu0 %v792
          %985 = vmatpush.msra.mxu0 %v790
          %986 = vmatpush.msra.mxu0 %v788
          %987 = vmatpush.msra.mxu0 %v786
          %988 = vmatpush.msra.mxu0 %v784
          %989 = vmatmul.f32.gmra.mxu0 %v717
          %v990 = vpop.f32.mrf.mxu0
          %v991 = vadd.f32 %v971, %v990
          %992 = vdwg.mxu0
          %993 = vmatpush.msra.mxu0 %v846
          %994 = vmatpush.msra.mxu0 %v844
          %995 = vmatpush.msra.mxu0 %v842
          %996 = vmatpush.msra.mxu0 %v840
          %997 = vmatpush.msra.mxu0 %v838
          %998 = vmatpush.msra.mxu0 %v836
          %999 = vmatpush.msra.mxu0 %v834
          %1000 = vmatpush.msra.mxu0 %v832
          %1001 = vmatpush.msra.mxu0 %v830
          %1002 = vmatpush.msra.mxu0 %v828
          %1003 = vmatpush.msra.mxu0 %v826
          %1004 = vmatpush.msra.mxu0 %v824
          %1005 = vmatpush.msra.mxu0 %v822
          %1006 = vmatpush.msra.mxu0 %v820
          %1007 = vmatpush.msra.mxu0 %v818
          %1008 = vmatpush.msra.mxu0 %v816
          %1009 = vmatmul.f32.gmra.mxu0 %v718
          %v1010 = vpop.f32.mrf.mxu0
          %v1011 = vadd.f32 %v991, %v1010
          %1012 = vdwg.mxu0
          %v1013 = vmax.f32 %v931, 0.0
          %v1014 = vmax.f32 %v1011, 0.0
          %v1015 = vld [vmem:[%s5] sm:$0xff]
          %v1016 = vld [vmem:[%s5 + $0x8] sm:$0xff]
          %v1017 = vld [vmem:[%s5 + $0x10] sm:$0xff]
          %v1018 = vld [vmem:[%s5 + $0x18] sm:$0xff]
          %v1019 = vld [vmem:[%s5 + $0x20] sm:$0xff]
          %v1020 = vld [vmem:[%s5 + $0x28] sm:$0xff]
          %v1021 = vld [vmem:[%s5 + $0x30] sm:$0xff]
          %v1022 = vld [vmem:[%s5 + $0x38] sm:$0xff]
          %v1023 = vld [vmem:[%s5 + $0x40] sm:$0xff]
          %v1024 = vld [vmem:[%s5 + $0x48] sm:$0xff]
          %v1025 = vld [vmem:[%s5 + $0x50] sm:$0xff]
          %v1026 = vld [vmem:[%s5 + $0x58] sm:$0xff]
          %v1027 = vld [vmem:[%s5 + $0x60] sm:$0xff]
          %v1028 = vld [vmem:[%s5 + $0x68] sm:$0xff]
          %v1029 = vld [vmem:[%s5 + $0x70] sm:$0xff]
          %v1030 = vld [vmem:[%s5 + $0x78] sm:$0xff]
          %v1031 = vld [vmem:[%s5 + $0x80] sm:$0xff]
          %v1032 = vld [vmem:[%s5 + $0x88] sm:$0xff]
          %v1033 = vld [vmem:[%s5 + $0x90] sm:$0xff]
          %v1034 = vld [vmem:[%s5 + $0x98] sm:$0xff]
          %v1035 = vld [vmem:[%s5 + $0xa0] sm:$0xff]
          %v1036 = vld [vmem:[%s5 + $0xa8] sm:$0xff]
          %v1037 = vld [vmem:[%s5 + $0xb0] sm:$0xff]
          %v1038 = vld [vmem:[%s5 + $0xb8] sm:$0xff]
          %v1039 = vld [vmem:[%s5 + $0xc0] sm:$0xff]
          %v1040 = vld [vmem:[%s5 + $0xc8] sm:$0xff]
          %v1041 = vld [vmem:[%s5 + $0xd0] sm:$0xff]
          %v1042 = vld [vmem:[%s5 + $0xd8] sm:$0xff]
          %v1043 = vld [vmem:[%s5 + $0xe0] sm:$0xff]
          %v1044 = vld [vmem:[%s5 + $0xe8] sm:$0xff]
          %v1045 = vld [vmem:[%s5 + $0xf0] sm:$0xff]
          %v1046 = vld [vmem:[%s5 + $0xf8] sm:$0xff]
          %v1047 = vld [vmem:[#allocation3] sm:$0x1]
          %v1049 = vperm.slane %v1047, 0
          %1051 = vmatpush.msra.mxu0 %v1030
          %1052 = vmatpush.msra.mxu0 %v1029
          %1053 = vmatpush.msra.mxu0 %v1028
          %1054 = vmatpush.msra.mxu0 %v1027
          %1055 = vmatpush.msra.mxu0 %v1026
          %1056 = vmatpush.msra.mxu0 %v1025
          %1057 = vmatpush.msra.mxu0 %v1024
          %1058 = vmatpush.msra.mxu0 %v1023
          %1059 = vmatpush.msra.mxu0 %v1022
          %1060 = vmatpush.msra.mxu0 %v1021
          %1061 = vmatpush.msra.mxu0 %v1020
          %1062 = vmatpush.msra.mxu0 %v1019
          %1063 = vmatpush.msra.mxu0 %v1018
          %1064 = vmatpush.msra.mxu0 %v1017
          %1065 = vmatpush.msra.mxu0 %v1016
          %1066 = vmatpush.msra.mxu0 %v1015
          %1067 = vmatmul.f32.gmra.mxu0 %v1013
          %v1068 = vpop.f32.mrf.mxu0
          %v1069 = vadd.f32 %v1049, %v1068
          %1070 = vdwg.mxu0
          %1071 = vmatpush.msra.mxu0 %v1046
          %1072 = vmatpush.msra.mxu0 %v1045
          %1073 = vmatpush.msra.mxu0 %v1044
          %1074 = vmatpush.msra.mxu0 %v1043
          %1075 = vmatpush.msra.mxu0 %v1042
          %1076 = vmatpush.msra.mxu0 %v1041
          %1077 = vmatpush.msra.mxu0 %v1040
          %1078 = vmatpush.msra.mxu0 %v1039
          %1079 = vmatpush.msra.mxu0 %v1038
          %1080 = vmatpush.msra.mxu0 %v1037
          %1081 = vmatpush.msra.mxu0 %v1036
          %1082 = vmatpush.msra.mxu0 %v1035
          %1083 = vmatpush.msra.mxu0 %v1034
          %1084 = vmatpush.msra.mxu0 %v1033
          %1085 = vmatpush.msra.mxu0 %v1032
          %1086 = vmatpush.msra.mxu0 %v1031
          %1087 = vmatmul.f32.gmra.mxu0 %v1014
          %v1088 = vpop.f32.mrf.mxu0
          %v1089 = vadd.f32 %v1069, %v1088
          %1090 = vdwg.mxu0
          %vm1091 = vcmask 7168
          %1092 = vst.msk [vmem:[%s435] sm:$0xff] %vm1091, %v1089
        $region105: #{tpu_custom_call.1} parent=84 // pred_fallthru
          _
        %p1093 = scmp.lt.s32.totalorder %s26, 0
        %s1094 = scalar_select %p1093, %s26, 0
        %s1095 = smul.addr %s1094, 8
        %s1096 = scalar_lea.vmem %s7, %s1095
        // Predicated region
        $region106: #{tpu_custom_call.1} parent=84 // pred_check
          %p1097 = pneg %p206
        $region107: #{tpu_custom_call.1} parent=84 // pred_check_branch
          %1099 = sbr.rel (%p1097) target = $region109
        $region108: #{tpu_custom_call.1} parent=84 // pred_region
          _
        $region109: #{tpu_custom_call.1} parent=84 // pred_fallthru
          _
        // Predicated region
        $region110: #{tpu_custom_call.1} parent=84 // pred_check
          %p1100 = pneg %p206
        $region111: #{tpu_custom_call.1} parent=84 // pred_check_branch
          %1102 = sbr.rel (%p1100) target = $region113
        $region112: #{tpu_custom_call.1} parent=84 // pred_region
          %p1103 = scmp.lt.s32.totalorder %s26, 0
          %s1104 = scalar_select %p1103, %s26, 0
          %s1105 = smul.addr %s1104, 8
          %s1106 = scalar_lea.vmem %s7, %s1105
        $region113: #{tpu_custom_call.1} parent=84 // pred_fallthru
          _
      $region85: #{tpu_custom_call.1} parent=5 // pred_fallthru
        _
      %p1107 = scmp.le.s32.totalorder 2, %s17
      // Predicated region
      $region114: #{tpu_custom_call.1} parent=5 // pred_check
        %p1108 = pneg %p1107
      $region115: #{tpu_custom_call.1} parent=5 // pred_check_branch
        %1110 = sbr.rel (%p1108) target = $region117
      $region116: #{tpu_custom_call.1} parent=5 // pred_region
        %s1111 = ssub.s32 %s17, 2
      $region117: #{tpu_custom_call.1} parent=5 // pred_fallthru
        _
    $region6: #{tpu_custom_call.1} parent=1 // loop_footer
      %s21 = sadd.s32 1, %s17
    $region7: #{tpu_custom_call.1} parent=1 // loop_footer_branch
      %16 = sbr.rel target = $region3
    $region8: #{tpu_custom_call.1} parent=1 // loop_exit
      _
    %1112 = vsyncpa [#allocation6], 1
    %s1113 = scalar_lea.sflag [#allocation6], 1
    %1114 = vsyncpa %s1113, 1
    %1115 = vsyncpa [#allocation8], 1

</llo_original>
